<compile_context>
chip_gen: v7x
topology: tpu7x:2x2x1
jax: 0.10.0
libtpu: 0.0.40
codegen_flags: <defaults>
</compile_context>

<pallas_src>
import jax
import jax.numpy as jnp
from jax.experimental import pallas as pl
from jax.experimental.pallas import tpu as pltpu


def _round_up(x, m):
    return ((x + m - 1) // m) * m


def _vmem_capacity_bytes():
    """Physical VMEM per TensorCore; safe 128 MiB (v5e/v6e) fallback."""
    try:
        cap = getattr(pltpu.get_tpu_info(), "vmem_capacity_bytes", None)
        if cap:
            return int(cap)
    except Exception:
        pass
    return 128 * 2**20


def _cls_head_kernel(x_ref, w1_ref, b1_ref, w2_ref, b2_ref, o_ref):
    # x_ref:  [TB, H]   CLS-token features tile (pipelined over the batch grid)
    # w1_ref: [H, H]    dense weight (in, out)            -- VMEM-resident
    # b1_ref: [1, H]    dense bias, f32                   -- VMEM-resident
    # w2_ref: [H, Lp]   out_proj weight, lane-padded      -- VMEM-resident
    # b2_ref: [1, Lp]   out_proj bias, f32, lane-padded   -- VMEM-resident
    # o_ref:  [TB, Lp]  logits tile (lane-dense store)
    #
    # Both dropout sites are identity in eval mode.
    # TODO(synk): training-mode dropout (pltpu.prng_seed / prng_random_bits) not implemented.
    x = x_ref[...].astype(w1_ref.dtype)                 # no-op when pre-cast in the wrapper
    h = jnp.dot(x, w1_ref[...], preferred_element_type=jnp.float32)
    h = jnp.tanh(h + b1_ref[...])                        # f32 bias add (VPU) + tanh (EUP)
    h = h.astype(w2_ref.dtype)
    logits = jnp.dot(h, w2_ref[...], preferred_element_type=jnp.float32)
    o_ref[...] = (logits + b2_ref[...]).astype(o_ref.dtype)


def roberta_prelayernorm_classification_head(
    features, dense_w, dense_b, out_proj_w, out_proj_b,
    *, weight_dtype=jnp.bfloat16, max_batch_tile=1024):
    """features: [B, S, H]; weights stored [in, out]. Returns logits [B, num_labels]."""
    B, S, H = features.shape
    L = out_proj_w.shape[1]
    Lp = _round_up(L, 128)                         # lane-dense output
    out_dtype = features.dtype

    # --- CLS extraction strategy --------------------------------------------
    fold_cls = (H % 128 == 0)
    if fold_cls:
        # View features as [B, S*H]; the x BlockSpec fetches block (i, 0) == the CLS
        # rows straight from HBM (no wrapper slice, no extra activation round trip).
        x_in = features.reshape(B, S * H)
        x_itemsize = jnp.dtype(x_in.dtype).itemsize
    else:
        # Toy H (not a 128-multiple): slice in the wrapper and fuse the MXU-dtype
        # cast so the streamed per-tile x DMA is already in the weight dtype.
        x_in = features[:, 0, :].astype(weight_dtype)
        x_itemsize = jnp.dtype(weight_dtype).itemsize

    # --- batch tile ----------------------------------------------------------
    TB = (4 << 20) // max(1, H * x_itemsize)       # ~4 MiB x tile (>=85% HBM roofline regime)
    TB = min(TB, max_batch_tile)
    TB = min(TB, _round_up(B, 8))                  # never larger than the batch needs
    if B >= 16:                                    # >= 2 tiles so both v7x TCs get work
        TB = min(TB, _round_up(pl.cdiv(B, 2), 8))
    TB = max(8, (TB // 8) * 8)                     # sublane alignment
    num_tiles = pl.cdiv(B, TB)                     # ragged last tile handled by Pallas

    # --- MXU operands ---------------------------------------------------------
    w1 = dense_w.astype(weight_dtype)              # [H, H]
    w2 = out_proj_w.astype(weight_dtype)           # [H, L]
    b1 = dense_b.astype(jnp.float32).reshape(1, H)
    b2 = out_proj_b.astype(jnp.float32).reshape(1, L)
    if Lp != L:
        w2 = jnp.pad(w2, ((0, 0), (0, Lp - L)))    # [H, Lp]
        b2 = jnp.pad(b2, ((0, 0), (0, Lp - L)))    # [1, Lp]

    w_bytes = jnp.dtype(weight_dtype).itemsize
    o_bytes = jnp.dtype(out_dtype).itemsize
    vmem_cap = _vmem_capacity_bytes()

    def run(single_buffer_weights):
        wbuf = 1 if single_buffer_weights else 2
        vmem_est = (2 * TB * H * x_itemsize                  # x tiles (double-buffered)
                    + 2 * TB * Lp * o_bytes                  # out tiles (double-buffered)
                    + TB * (H + Lp) * 4                      # in-kernel f32 intermediates
                    + wbuf * (H * H + H * Lp) * w_bytes      # resident weights
                    + wbuf * (H + Lp) * 4)                   # resident biases
        # Cap at physical VMEM minus 16 MiB headroom (~48 MiB on v7x, ~112 MiB v5e/v6e).
        headroom_cap = max(32 << 20, vmem_cap - (16 << 20))
        vmem_limit = int(min(headroom_cap, max(32 << 20, 2 * vmem_est)))
        # TODO(synk): for very large H (>= ~6k bf16) W1 no longer fits resident;
        # K-tile it with an f32 accumulator scratch instead of raising vmem_limit.

        def w_spec(shape):
            if single_buffer_weights:
                return pl.BlockSpec(shape, lambda i: (0, 0),
                                    pipeline_mode=pl.Buffered(1))
            return pl.BlockSpec(shape, lambda i: (0, 0))

        return pl.pallas_call(
            _cls_head_kernel,
            out_shape=jax.ShapeDtypeStruct((B, Lp), out_dtype),
            grid=(num_tiles,),
            in_specs=[
                pl.BlockSpec((TB, H), lambda i: (i, 0)),     # x tile (CLS rows), pipelined
                w_spec((H, H)),                              # W1, resident
                w_spec((1, H)),                              # b1, resident
                w_spec((H, Lp)),                             # W2, resident
                w_spec((1, Lp)),                             # b2, resident
            ],
            out_specs=pl.BlockSpec((TB, Lp), lambda i: (i, 0)),
            compiler_params=pltpu.CompilerParams(
                dimension_semantics=("parallel",),           # shard batch tiles across TCs (v7x)
                vmem_limit_bytes=vmem_limit,
            ),
        )(x_in, w1, b1, w2, b2)

    try:
        out = run(True)
    except Exception:
        # Fallback if this JAX/Mosaic build rejects single-buffered (Buffered(1)) specs.
        out = run(False)

    return out[:, :L]


def _reference(features, dense_w, dense_b, out_proj_w, out_proj_b):
    x = features[:, 0, :]
    x = jnp.tanh(x @ dense_w + dense_b)
    return x @ out_proj_w + out_proj_b


if __name__ == "__main__":
    key = jax.random.PRNGKey(0)

    def make_inputs(k, B, S, H, L):
        k_feat, k_w1, k_b1, k_w2, k_b2 = jax.random.split(k, 5)
        features = jax.random.normal(k_feat, (B, S, H), dtype=jnp.float32)
        dense_w = jax.random.normal(k_w1, (H, H), dtype=jnp.float32) * 0.02
        dense_b = jax.random.normal(k_b1, (H,), dtype=jnp.float32) * 0.02
        out_proj_w = jax.random.normal(k_w2, (H, L), dtype=jnp.float32) * 0.02
        out_proj_b = jax.random.normal(k_b2, (L,), dtype=jnp.float32) * 0.02
        return features, dense_w, dense_b, out_proj_w, out_proj_b

    k1, k2 = jax.random.split(key)

    # Case 1: config-like toy shapes (wrapper-slice path, H not a 128-multiple).
    args1 = make_inputs(k1, B=2, S=8, H=32, L=4)
    ref1 = _reference(*args1)

    out_f32 = roberta_prelayernorm_classification_head(*args1, weight_dtype=jnp.float32)
    out_f32 = jax.block_until_ready(out_f32)
    assert out_f32.shape == (2, 4)
    assert jnp.allclose(out_f32, ref1, atol=1e-4, rtol=1e-4), "case1 f32 mismatch vs reference"

    out_bf16 = roberta_prelayernorm_classification_head(*args1, weight_dtype=jnp.bfloat16)
    out_bf16 = jax.block_until_ready(out_bf16)
    assert out_bf16.shape == (2, 4)
    assert jnp.allclose(out_bf16, ref1, atol=2e-2, rtol=2e-2), "case1 bf16 mismatch vs reference"

    # Case 2: H a multiple of 128 -> CLS fold path, >= 2 grid tiles, ragged last tile,
    # lane-padded num_labels.
    args2 = make_inputs(k2, B=24, S=4, H=128, L=3)
    ref2 = _reference(*args2)
    out2 = roberta_prelayernorm_classification_head(*args2, weight_dtype=jnp.float32)
    out2 = jax.block_until_ready(out2)
    assert out2.shape == (24, 3)
    assert jnp.allclose(out2, ref2, atol=5e-3, rtol=5e-3), "case2 f32 mismatch vs reference"

    print("KERNEL_OK")
</pallas_src>

<mosaic_0001>
module attributes {stable_mosaic.version = 11 : i64} {
  func.func @_cls_head_kernel(%arg0: i32, %arg1: memref<8x32xf32, #tpu.memory_space<vmem>>, %arg2: memref<32x32xf32, #tpu.memory_space<vmem>>, %arg3: memref<1x32xf32, #tpu.memory_space<vmem>>, %arg4: memref<32x128xf32, #tpu.memory_space<vmem>>, %arg5: memref<1x128xf32, #tpu.memory_space<vmem>>, %arg6: memref<8x128xf32, #tpu.memory_space<vmem>>) attributes {dimension_semantics = [#tpu.dimension_semantics<parallel>], iteration_bounds = array<i64: 1>, scalar_prefetch = 0 : i64, scratch_operands = 0 : i64, tpu.core_type = #tpu.core_type<tc>, window_params = [{transform_indices = @transform_0, window_bounds = array<i64: 8, 32>}, {pipeline_mode = #tpu.pipeline_mode<synchronous>, transform_indices = @transform_1, window_bounds = array<i64: 32, 32>}, {pipeline_mode = #tpu.pipeline_mode<synchronous>, transform_indices = @transform_2, window_bounds = array<i64: 1, 32>}, {pipeline_mode = #tpu.pipeline_mode<synchronous>, transform_indices = @transform_3, window_bounds = array<i64: 32, 128>}, {pipeline_mode = #tpu.pipeline_mode<synchronous>, transform_indices = @transform_4, window_bounds = array<i64: 1, 128>}, {transform_indices = @transform_5, window_bounds = array<i64: 8, 128>}]} {
    %c0 = arith.constant 0 : index
    %c0_0 = arith.constant 0 : index
    %0 = vector.load %arg1[%c0, %c0_0] : memref<8x32xf32, #tpu.memory_space<vmem>>, vector<8x32xf32>
    %c0_1 = arith.constant 0 : index
    %c0_2 = arith.constant 0 : index
    %1 = vector.load %arg2[%c0_1, %c0_2] : memref<32x32xf32, #tpu.memory_space<vmem>>, vector<32x32xf32>
    %cst = arith.constant dense<0.000000e+00> : vector<8x32xf32>
    %2 = tpu.matmul %0, %1, %cst {dimension_numbers = #tpu.dot_dimension_numbers<[1], [0], [0], [1], [0, 0, 1, 1], [], []>} : vector<8x32xf32>, vector<32x32xf32>, vector<8x32xf32> -> vector<8x32xf32>
    %c0_3 = arith.constant 0 : index
    %c0_4 = arith.constant 0 : index
    %3 = vector.load %arg3[%c0_3, %c0_4] : memref<1x32xf32, #tpu.memory_space<vmem>>, vector<1x32xf32>
    %4 = vector.broadcast %3 : vector<1x32xf32> to vector<8x32xf32>
    %5 = arith.addf %2, %4 : vector<8x32xf32>
    %6 = math.tanh %5 : vector<8x32xf32>
    %c0_5 = arith.constant 0 : index
    %c0_6 = arith.constant 0 : index
    %7 = vector.load %arg4[%c0_5, %c0_6] : memref<32x128xf32, #tpu.memory_space<vmem>>, vector<32x128xf32>
    %cst_7 = arith.constant dense<0.000000e+00> : vector<8x128xf32>
    %8 = tpu.matmul %6, %7, %cst_7 {dimension_numbers = #tpu.dot_dimension_numbers<[1], [0], [0], [1], [0, 0, 1, 1], [], []>} : vector<8x32xf32>, vector<32x128xf32>, vector<8x128xf32> -> vector<8x128xf32>
    %c0_8 = arith.constant 0 : index
    %c0_9 = arith.constant 0 : index
    %9 = vector.load %arg5[%c0_8, %c0_9] : memref<1x128xf32, #tpu.memory_space<vmem>>, vector<1x128xf32>
    %10 = vector.broadcast %9 : vector<1x128xf32> to vector<8x128xf32>
    %11 = arith.addf %8, %10 : vector<8x128xf32>
    %c0_10 = arith.constant 0 : index
    %c0_11 = arith.constant 0 : index
    %12 = vector.load %arg6[%c0_10, %c0_11] : memref<8x128xf32, #tpu.memory_space<vmem>>, vector<8x128xf32>
    tpu.vector_store %arg6[%c0_10, %c0_11], %11 {strides = array<i32>} : memref<8x128xf32, #tpu.memory_space<vmem>>, vector<8x128xf32>,
    return
  }
  func.func @transform_0(%arg0: i32) -> (i32, i32) {
    %c0_i32 = arith.constant 0 : i32
    %c0_i32_0 = arith.constant 0 : i32
    return %arg0, %c0_i32 : i32, i32
  }
  func.func @transform_1(%arg0: i32) -> (i32, i32) {
    %c0_i32 = arith.constant 0 : i32
    %c0_i32_0 = arith.constant 0 : i32
    %c0_i32_1 = arith.constant 0 : i32
    return %c0_i32, %c0_i32_0 : i32, i32
  }
  func.func @transform_2(%arg0: i32) -> (i32, i32) {
    %c0_i32 = arith.constant 0 : i32
    %c0_i32_0 = arith.constant 0 : i32
    %c0_i32_1 = arith.constant 0 : i32
    return %c0_i32, %c0_i32_0 : i32, i32
  }
  func.func @transform_3(%arg0: i32) -> (i32, i32) {
    %c0_i32 = arith.constant 0 : i32
    %c0_i32_0 = arith.constant 0 : i32
    %c0_i32_1 = arith.constant 0 : i32
    return %c0_i32, %c0_i32_0 : i32, i32
  }
  func.func @transform_4(%arg0: i32) -> (i32, i32) {
    %c0_i32 = arith.constant 0 : i32
    %c0_i32_0 = arith.constant 0 : i32
    %c0_i32_1 = arith.constant 0 : i32
    return %c0_i32, %c0_i32_0 : i32, i32
  }
  func.func @transform_5(%arg0: i32) -> (i32, i32) {
    %c0_i32 = arith.constant 0 : i32
    %c0_i32_0 = arith.constant 0 : i32
    return %arg0, %c0_i32 : i32, i32
  }
}

module attributes {stable_mosaic.version = 11 : i64} {
  func.func @_cls_head_kernel(%arg0: i32, %arg1: memref<8x32xf32, #tpu.memory_space<vmem>>, %arg2: memref<32x32xf32, #tpu.memory_space<vmem>>, %arg3: memref<1x32xf32, #tpu.memory_space<vmem>>, %arg4: memref<32x128xf32, #tpu.memory_space<vmem>>, %arg5: memref<1x128xf32, #tpu.memory_space<vmem>>, %arg6: memref<8x128xf32, #tpu.memory_space<vmem>>) attributes {dimension_semantics = [#tpu.dimension_semantics<parallel>], iteration_bounds = array<i64: 1>, scalar_prefetch = 0 : i64, scratch_operands = 0 : i64, tpu.core_type = #tpu.core_type<tc>, window_params = [{transform_indices = @transform_0, window_bounds = array<i64: 8, 32>}, {pipeline_mode = #tpu.pipeline_mode<synchronous>, transform_indices = @transform_1, window_bounds = array<i64: 32, 32>}, {pipeline_mode = #tpu.pipeline_mode<synchronous>, transform_indices = @transform_2, window_bounds = array<i64: 1, 32>}, {pipeline_mode = #tpu.pipeline_mode<synchronous>, transform_indices = @transform_3, window_bounds = array<i64: 32, 128>}, {pipeline_mode = #tpu.pipeline_mode<synchronous>, transform_indices = @transform_4, window_bounds = array<i64: 1, 128>}, {transform_indices = @transform_5, window_bounds = array<i64: 8, 128>}]} {
    %c0 = arith.constant 0 : index
    %c0_0 = arith.constant 0 : index
    %0 = vector.load %arg1[%c0, %c0_0] : memref<8x32xf32, #tpu.memory_space<vmem>>, vector<8x32xf32>
    %c0_1 = arith.constant 0 : index
    %c0_2 = arith.constant 0 : index
    %1 = vector.load %arg2[%c0_1, %c0_2] : memref<32x32xf32, #tpu.memory_space<vmem>>, vector<32x32xf32>
    %cst = arith.constant dense<0.000000e+00> : vector<8x32xf32>
    %2 = tpu.matmul %0, %1, %cst {dimension_numbers = #tpu.dot_dimension_numbers<[1], [0], [0], [1], [0, 0, 1, 1], [], []>} : vector<8x32xf32>, vector<32x32xf32>, vector<8x32xf32> -> vector<8x32xf32>
    %c0_3 = arith.constant 0 : index
    %c0_4 = arith.constant 0 : index
    %3 = vector.load %arg3[%c0_3, %c0_4] : memref<1x32xf32, #tpu.memory_space<vmem>>, vector<1x32xf32>
    %4 = vector.broadcast %3 : vector<1x32xf32> to vector<8x32xf32>
    %5 = arith.addf %2, %4 : vector<8x32xf32>
    %6 = math.tanh %5 : vector<8x32xf32>
    %c0_5 = arith.constant 0 : index
    %c0_6 = arith.constant 0 : index
    %7 = vector.load %arg4[%c0_5, %c0_6] : memref<32x128xf32, #tpu.memory_space<vmem>>, vector<32x128xf32>
    %cst_7 = arith.constant dense<0.000000e+00> : vector<8x128xf32>
    %8 = tpu.matmul %6, %7, %cst_7 {dimension_numbers = #tpu.dot_dimension_numbers<[1], [0], [0], [1], [0, 0, 1, 1], [], []>} : vector<8x32xf32>, vector<32x128xf32>, vector<8x128xf32> -> vector<8x128xf32>
    %c0_8 = arith.constant 0 : index
    %c0_9 = arith.constant 0 : index
    %9 = vector.load %arg5[%c0_8, %c0_9] : memref<1x128xf32, #tpu.memory_space<vmem>>, vector<1x128xf32>
    %10 = vector.broadcast %9 : vector<1x128xf32> to vector<8x128xf32>
    %11 = arith.addf %8, %10 : vector<8x128xf32>
    %c0_10 = arith.constant 0 : index
    %c0_11 = arith.constant 0 : index
    %12 = vector.load %arg6[%c0_10, %c0_11] : memref<8x128xf32, #tpu.memory_space<vmem>>, vector<8x128xf32>
    tpu.vector_store %arg6[%c0_10, %c0_11], %11 {strides = array<i32>} : memref<8x128xf32, #tpu.memory_space<vmem>>, vector<8x128xf32>,
    return
  }
  func.func @transform_0(%arg0: i32) -> (i32, i32) {
    %c0_i32 = arith.constant 0 : i32
    %c0_i32_0 = arith.constant 0 : i32
    return %arg0, %c0_i32 : i32, i32
  }
  func.func @transform_1(%arg0: i32) -> (i32, i32) {
    %c0_i32 = arith.constant 0 : i32
    %c0_i32_0 = arith.constant 0 : i32
    %c0_i32_1 = arith.constant 0 : i32
    return %c0_i32, %c0_i32_0 : i32, i32
  }
  func.func @transform_2(%arg0: i32) -> (i32, i32) {
    %c0_i32 = arith.constant 0 : i32
    %c0_i32_0 = arith.constant 0 : i32
    %c0_i32_1 = arith.constant 0 : i32
    return %c0_i32, %c0_i32_0 : i32, i32
  }
  func.func @transform_3(%arg0: i32) -> (i32, i32) {
    %c0_i32 = arith.constant 0 : i32
    %c0_i32_0 = arith.constant 0 : i32
    %c0_i32_1 = arith.constant 0 : i32
    return %c0_i32, %c0_i32_0 : i32, i32
  }
  func.func @transform_4(%arg0: i32) -> (i32, i32) {
    %c0_i32 = arith.constant 0 : i32
    %c0_i32_0 = arith.constant 0 : i32
    %c0_i32_1 = arith.constant 0 : i32
    return %c0_i32, %c0_i32_0 : i32, i32
  }
  func.func @transform_5(%arg0: i32) -> (i32, i32) {
    %c0_i32 = arith.constant 0 : i32
    %c0_i32_0 = arith.constant 0 : i32
    return %arg0, %c0_i32 : i32, i32
  }
}

</mosaic_0001>

<llo_original>
// kernel: tpu_custom_call.1
$region0: #{tpu_custom_call.1}
  #allocation0 [shape = 'u32[]', space=smem, size = 0x4, offset = 0x4, fixed_abs, tag = 'smem constant byte address 0x4 - core index']
  #allocation1 [shape = 'u32[144,128]{1,0:T(1,128)}', space=vmem, size = 0x12000, scoped, tag = 'internal scratch']
  %s0 = inlined_call_operand.hbm [shape: f32[2,32], index: 0, kind: input, shape index: {}]
  %s1 = inlined_call_operand.hbm [shape: f32[32,32], index: 1, kind: input, shape index: {}]
  %s2 = inlined_call_operand.vmem [shape: f32[1,32], index: 2, kind: input, shape index: {}]
  %s3 = inlined_call_operand.hbm [shape: f32[32,128], index: 3, kind: input, shape index: {}]
  %s4 = inlined_call_operand.vmem [shape: f32[1,128], index: 4, kind: input, shape index: {}]
  %s5 = inlined_call_operand.hbm [shape: f32[2,128], index: 5, kind: output, shape index: {}]
  %s6 = sld [smem:[#allocation0]]
  $region42: #{tpu_custom_call.1} parent=0
    _
  %s8 = ssub.s32 1, %s6
  %s9 = scalar_select 0, %s8, %s6
  $region1: #{tpu_custom_call.1} parent=0
    #allocation2 [shape = 'u8[4096]{0}', space=vmem, size = 0x1000, scoped, tag = 'input window, operand 0, single buffered']
    #allocation3 [shape = 's32[1]{0}', space=sflag, size = 0x4, scoped, tag = 'scoped memory for tpu_custom_call.1']
    #allocation4 [shape = 's32[1]{0}', space=sflag, size = 0x4, scoped, tag = 'scoped memory for tpu_custom_call.1']
    #allocation5 [shape = 'u8[16384]{0}', space=vmem, size = 0x4000, scoped, tag = 'input window, operand 1, single buffered']
    #allocation6 [shape = 's32[1]{0}', space=sflag, size = 0x4, scoped, tag = 'scoped memory for tpu_custom_call.1']
    #allocation7 [shape = 'u8[16384]{0}', space=vmem, size = 0x4000, scoped, tag = 'input window, operand 3, single buffered']
    #allocation8 [shape = 'u8[4096]{0}', space=vmem, size = 0x1000, scoped, tag = 'output window, operand 0, single buffered']
    %10 = vsyncpa [#allocation3], 0
    %11 = vsyncpa [#allocation6], 0
    %12 = vsyncpa [#allocation4], 0
    // Predicated region
    $region2: #{tpu_custom_call.1} parent=1 // pred_check
      _
    $region3: #{tpu_custom_call.1} parent=1 // pred_check_branch
      %14 = sbr.rel (0) target = $region5
    $region4: #{tpu_custom_call.1} parent=1 // pred_region
      %s16 = ssub.s32 128, 32
      %17 = vsyncadd [#allocation3], %s16
      %s18 = sshll.u32 [#allocation2], 4
      %s19 = int_to_ptr.vmem [resolvable:$true] %s18
      %24 = dma.hbm_to_vmem [thread:$0]  %s0, 32, %s19, [#allocation3], 32, 32, 2
    $region5: #{tpu_custom_call.1} parent=1 // pred_fallthru
      _
    // Predicated region
    $region6: #{tpu_custom_call.1} parent=1 // pred_check
      _
    $region7: #{tpu_custom_call.1} parent=1 // pred_check_branch
      %26 = sbr.rel (0) target = $region9
    $region8: #{tpu_custom_call.1} parent=1 // pred_region
      %s28 = ssub.s32 512, 512
      %29 = vsyncadd [#allocation6], %s28
      %s30 = sshll.u32 [#allocation5], 4
      %s31 = int_to_ptr.vmem [resolvable:$true] %s30
      %36 = dma.hbm_to_vmem [thread:$0]  %s1, 512, %s31, [#allocation6], 128, 128, 8
    $region9: #{tpu_custom_call.1} parent=1 // pred_fallthru
      _
    // Predicated region
    $region10: #{tpu_custom_call.1} parent=1 // pred_check
      _
    $region11: #{tpu_custom_call.1} parent=1 // pred_check_branch
      %38 = sbr.rel (0) target = $region13
    $region12: #{tpu_custom_call.1} parent=1 // pred_region
      _
    $region13: #{tpu_custom_call.1} parent=1 // pred_fallthru
      _
    // Predicated region
    $region14: #{tpu_custom_call.1} parent=1 // pred_check
      _
    $region15: #{tpu_custom_call.1} parent=1 // pred_check_branch
      %40 = sbr.rel (0) target = $region17
    $region16: #{tpu_custom_call.1} parent=1 // pred_region
      %s42 = ssub.s32 512, 512
      %43 = vsyncadd [#allocation6], %s42
      %s44 = sshll.u32 [#allocation7], 4
      %s45 = int_to_ptr.vmem [resolvable:$true] %s44
      %50 = dma.hbm_to_vmem [thread:$0]  %s3, 512, %s45, [#allocation6], 128, 128, 8
    $region17: #{tpu_custom_call.1} parent=1 // pred_fallthru
      _
    // Predicated region
    $region18: #{tpu_custom_call.1} parent=1 // pred_check
      _
    $region19: #{tpu_custom_call.1} parent=1 // pred_check_branch
      %52 = sbr.rel (0) target = $region21
    $region20: #{tpu_custom_call.1} parent=1 // pred_region
      _
    $region21: #{tpu_custom_call.1} parent=1 // pred_fallthru
      _
    // Predicated region
    $region22: #{tpu_custom_call.1} parent=1 // pred_check
      _
    $region23: #{tpu_custom_call.1} parent=1 // pred_check_branch
      %54 = sbr.rel (0) target = $region25
    $region24: #{tpu_custom_call.1} parent=1 // pred_region
      %55 = dma.done [#allocation3], 128
    $region25: #{tpu_custom_call.1} parent=1 // pred_fallthru
      _
    // Predicated region
    $region26: #{tpu_custom_call.1} parent=1 // pred_check
      _
    $region27: #{tpu_custom_call.1} parent=1 // pred_check_branch
      %57 = sbr.rel (0) target = $region29
    $region28: #{tpu_custom_call.1} parent=1 // pred_region
      %58 = dma.done [#allocation6], 512
    $region29: #{tpu_custom_call.1} parent=1 // pred_fallthru
      _
    // Predicated region
    $region30: #{tpu_custom_call.1} parent=1 // pred_check
      _
    $region31: #{tpu_custom_call.1} parent=1 // pred_check_branch
      %60 = sbr.rel (0) target = $region33
    $region32: #{tpu_custom_call.1} parent=1 // pred_region
      %61 = dma.done [#allocation6], 512
    $region33: #{tpu_custom_call.1} parent=1 // pred_fallthru
      _
    %v62 = vld [vmem:[#allocation2] sm:$0xff]
    %v63 = vld [vmem:[#allocation5] sm:$0xff]
    %v64 = vld [vmem:[#allocation5 + $0x8] sm:$0xff]
    %v65 = vld [vmem:[#allocation5 + $0x10] sm:$0xff]
    %v66 = vld [vmem:[#allocation5 + $0x18] sm:$0xff]
    %v67 = vld [vmem:[%s2] sm:$0x1]
    %v69 = vlaneseq
    %v70 = vshrl.u32 %v69, 7
    %v71 = vsub.s32 0, %v70
    %v72 = vrot.slane %v67, %v71
    %vm74 = vcmask 261120
    %v76 = vsel %vm74, %v62, 0
    %78 = vmatprep.subr.mxu0 0.0
    %79 = vmatpush1.msra.mxu0 %v63
    %80 = vmatprep.subr.mxu0 0.0
    %81 = vmatpush1.msra.mxu0 %v64
    %82 = vmatprep.subr.mxu0 0.0
    %83 = vmatpush1.msra.mxu0 %v65
    %84 = vmatprep.subr.mxu0 0.0
    %85 = vmatpush1.msra.mxu0 %v66
    %86 = vmatprep.subr.mxu0 0.0
    %87 = vmatpush1.msra.mxu0 0.0
    %88 = vmatprep.subr.mxu0 0.0
    %89 = vmatpush1.msra.mxu0 0.0
    %90 = vmatprep.subr.mxu0 0.0
    %91 = vmatpush1.msra.mxu0 0.0
    %92 = vmatprep.subr.mxu0 0.0
    %93 = vmatpush1.msra.mxu0 0.0
    %94 = vmatprep.subr.mxu0 0.0
    %95 = vmatpush1.msra.mxu0 0.0
    %96 = vmatprep.subr.mxu0 0.0
    %97 = vmatpush1.msra.mxu0 0.0
    %98 = vmatprep.subr.mxu0 0.0
    %99 = vmatpush1.msra.mxu0 0.0
    %100 = vmatprep.subr.mxu0 0.0
    %101 = vmatpush1.msra.mxu0 0.0
    %102 = vmatprep.subr.mxu0 0.0
    %103 = vmatpush1.msra.mxu0 0.0
    %104 = vmatprep.subr.mxu0 0.0
    %105 = vmatpush1.msra.mxu0 0.0
    %106 = vmatprep.subr.mxu0 0.0
    %107 = vmatpush1.msra.mxu0 0.0
    %108 = vmatprep.subr.mxu0 0.0
    %109 = vmatpush1.msra.mxu0 0.0
    %110 = vmatprep.subr.mxu0 0.0
    %111 = vmatpush1.msra.mxu0 0.0
    %112 = vmatprep.subr.mxu0 0.0
    %113 = vmatpush1.msra.mxu0 0.0
    %114 = vmatprep.subr.mxu0 0.0
    %115 = vmatpush1.msra.mxu0 0.0
    %116 = vmatprep.subr.mxu0 0.0
    %117 = vmatpush1.msra.mxu0 0.0
    %118 = vmatprep.subr.mxu0 0.0
    %119 = vmatpush1.msra.mxu0 0.0
    %120 = vmatprep.subr.mxu0 0.0
    %121 = vmatpush1.msra.mxu0 0.0
    %122 = vmatprep.subr.mxu0 0.0
    %123 = vmatpush1.msra.mxu0 0.0
    %124 = vmatprep.subr.mxu0 0.0
    %125 = vmatpush1.msra.mxu0 0.0
    %126 = vmatprep.subr.mxu0 0.0
    %127 = vmatpush1.msra.mxu0 0.0
    %128 = vmatprep.subr.mxu0 0.0
    %129 = vmatpush1.msra.mxu0 0.0
    %130 = vmatprep.subr.mxu0 0.0
    %131 = vmatpush1.msra.mxu0 0.0
    %132 = vmatprep.subr.mxu0 0.0
    %133 = vmatpush1.msra.mxu0 0.0
    %134 = vmatprep.subr.mxu0 0.0
    %135 = vmatpush1.msra.mxu0 0.0
    %136 = vmatprep.subr.mxu0 0.0
    %137 = vmatpush1.msra.mxu0 0.0
    %138 = vmatprep.subr.mxu0 0.0
    %139 = vmatpush1.msra.mxu0 0.0
    %140 = vmatprep.subr.mxu0 0.0
    %141 = vmatpush1.msra.mxu0 0.0
    %142 = vmatprep.mubr.f32.mxu0 0.0
    %143 = vmatmul.mubr.f32.gmra.mrb[0].mxu0 %v76
    %v144 = vpop.f32.mrb[0].mxu0
    %v145 = vadd.f32 %v72, %v144
    %v146 = vpop.f32.mrb[0].mxu0
    %147 = vdwg.mxu0
    %v148 = vtanh.pop %v145
    %v149 = vld [vmem:[#allocation7] sm:$0xff]
    %v150 = vld [vmem:[#allocation7 + $0x8] sm:$0xff]
    %v151 = vld [vmem:[#allocation7 + $0x10] sm:$0xff]
    %v152 = vld [vmem:[#allocation7 + $0x18] sm:$0xff]
    %v153 = vld [vmem:[%s4] sm:$0x1]
    %v155 = vlaneseq
    %v156 = vshrl.u32 %v155, 7
    %v157 = vsub.s32 0, %v156
    %v158 = vrot.slane %v153, %v157
    %v161 = vsel %vm74, %v148, 0
    %163 = vmatprep.subr.mxu0 0.0
    %164 = vmatpush1.msra.mxu0 %v149
    %165 = vmatprep.subr.mxu0 0.0
    %166 = vmatpush1.msra.mxu0 %v150
    %167 = vmatprep.subr.mxu0 0.0
    %168 = vmatpush1.msra.mxu0 %v151
    %169 = vmatprep.subr.mxu0 0.0
    %170 = vmatpush1.msra.mxu0 %v152
    %171 = vmatprep.subr.mxu0 0.0
    %172 = vmatpush1.msra.mxu0 0.0
    %173 = vmatprep.subr.mxu0 0.0
    %174 = vmatpush1.msra.mxu0 0.0
    %175 = vmatprep.subr.mxu0 0.0
    %176 = vmatpush1.msra.mxu0 0.0
    %177 = vmatprep.subr.mxu0 0.0
    %178 = vmatpush1.msra.mxu0 0.0
    %179 = vmatprep.subr.mxu0 0.0
    %180 = vmatpush1.msra.mxu0 0.0
    %181 = vmatprep.subr.mxu0 0.0
    %182 = vmatpush1.msra.mxu0 0.0
    %183 = vmatprep.subr.mxu0 0.0
    %184 = vmatpush1.msra.mxu0 0.0
    %185 = vmatprep.subr.mxu0 0.0
    %186 = vmatpush1.msra.mxu0 0.0
    %187 = vmatprep.subr.mxu0 0.0
    %188 = vmatpush1.msra.mxu0 0.0
    %189 = vmatprep.subr.mxu0 0.0
    %190 = vmatpush1.msra.mxu0 0.0
    %191 = vmatprep.subr.mxu0 0.0
    %192 = vmatpush1.msra.mxu0 0.0
    %193 = vmatprep.subr.mxu0 0.0
    %194 = vmatpush1.msra.mxu0 0.0
    %195 = vmatprep.subr.mxu0 0.0
    %196 = vmatpush1.msra.mxu0 0.0
    %197 = vmatprep.subr.mxu0 0.0
    %198 = vmatpush1.msra.mxu0 0.0
    %199 = vmatprep.subr.mxu0 0.0
    %200 = vmatpush1.msra.mxu0 0.0
    %201 = vmatprep.subr.mxu0 0.0
    %202 = vmatpush1.msra.mxu0 0.0
    %203 = vmatprep.subr.mxu0 0.0
    %204 = vmatpush1.msra.mxu0 0.0
    %205 = vmatprep.subr.mxu0 0.0
    %206 = vmatpush1.msra.mxu0 0.0
    %207 = vmatprep.subr.mxu0 0.0
    %208 = vmatpush1.msra.mxu0 0.0
    %209 = vmatprep.subr.mxu0 0.0
    %210 = vmatpush1.msra.mxu0 0.0
    %211 = vmatprep.subr.mxu0 0.0
    %212 = vmatpush1.msra.mxu0 0.0
    %213 = vmatprep.subr.mxu0 0.0
    %214 = vmatpush1.msra.mxu0 0.0
    %215 = vmatprep.subr.mxu0 0.0
    %216 = vmatpush1.msra.mxu0 0.0
    %217 = vmatprep.subr.mxu0 0.0
    %218 = vmatpush1.msra.mxu0 0.0
    %219 = vmatprep.subr.mxu0 0.0
    %220 = vmatpush1.msra.mxu0 0.0
    %221 = vmatprep.subr.mxu0 0.0
    %222 = vmatpush1.msra.mxu0 0.0
    %223 = vmatprep.subr.mxu0 0.0
    %224 = vmatpush1.msra.mxu0 0.0
    %225 = vmatprep.subr.mxu0 0.0
    %226 = vmatpush1.msra.mxu0 0.0
    %227 = vmatprep.mubr.f32.mxu0 0.0
    %228 = vmatmul.mubr.f32.gmra.mrb[0].mxu0 %v161
    %v229 = vpop.f32.mrb[0].mxu0
    %v230 = vadd.f32 %v158, %v229
    %v231 = vpop.f32.mrb[0].mxu0
    %232 = vdwg.mxu0
    %233 = vst [vmem:[#allocation8] sm:$0xff] %v230
    // Predicated region
    $region34: #{tpu_custom_call.1} parent=1 // pred_check
      _
    $region35: #{tpu_custom_call.1} parent=1 // pred_check_branch
      %235 = sbr.rel (0) target = $region37
    $region36: #{tpu_custom_call.1} parent=1 // pred_region
      %s237 = ssub.s32 128, 32
      %238 = vsyncadd [#allocation4], %s237
      %s239 = sshll.u32 [#allocation8], 4
      %s240 = int_to_ptr.vmem [resolvable:$true] %s239
      %245 = dma.vmem_to_hbm [thread:$0]  %s240, 32, %s5, [#allocation4], 32, 32, 2
    $region37: #{tpu_custom_call.1} parent=1 // pred_fallthru
      _
    // Predicated region
    $region38: #{tpu_custom_call.1} parent=1 // pred_check
      _
    $region39: #{tpu_custom_call.1} parent=1 // pred_check_branch
      %247 = sbr.rel (0) target = $region41
    $region40: #{tpu_custom_call.1} parent=1 // pred_region
      %248 = dma.done [#allocation4], 128
    $region41: #{tpu_custom_call.1} parent=1 // pred_fallthru
      _
    %249 = vsyncpa [#allocation3], 1
    %250 = vsyncpa [#allocation6], 1
    %251 = vsyncpa [#allocation4], 1

// kernel: tpu_custom_call.1
$region0: #{tpu_custom_call.1}
  #allocation0 [shape = 'u32[]', space=smem, size = 0x4, offset = 0x4, fixed_abs, tag = 'smem constant byte address 0x4 - core index']
  #allocation1 [shape = 'u32[144,128]{1,0:T(1,128)}', space=vmem, size = 0x12000, scoped, tag = 'internal scratch']
  %s0 = inlined_call_operand.hbm [shape: f32[2,32], index: 0, kind: input, shape index: {}]
  %s1 = inlined_call_operand.hbm [shape: f32[32,32], index: 1, kind: input, shape index: {}]
  %s2 = inlined_call_operand.vmem [shape: f32[1,32], index: 2, kind: input, shape index: {}]
  %s3 = inlined_call_operand.hbm [shape: f32[32,128], index: 3, kind: input, shape index: {}]
  %s4 = inlined_call_operand.vmem [shape: f32[1,128], index: 4, kind: input, shape index: {}]
  %s5 = inlined_call_operand.hbm [shape: f32[2,128], index: 5, kind: output, shape index: {}]
  %s6 = sld [smem:[#allocation0]]
  $region42: #{tpu_custom_call.1} parent=0
    _
  %s8 = ssub.s32 1, %s6
  %s9 = scalar_select 0, %s8, %s6
  $region1: #{tpu_custom_call.1} parent=0
    #allocation2 [shape = 'u8[4096]{0}', space=vmem, size = 0x1000, scoped, tag = 'input window, operand 0, single buffered']
    #allocation3 [shape = 's32[1]{0}', space=sflag, size = 0x4, scoped, tag = 'scoped memory for tpu_custom_call.1']
    #allocation4 [shape = 's32[1]{0}', space=sflag, size = 0x4, scoped, tag = 'scoped memory for tpu_custom_call.1']
    #allocation5 [shape = 'u8[16384]{0}', space=vmem, size = 0x4000, scoped, tag = 'input window, operand 1, single buffered']
    #allocation6 [shape = 's32[1]{0}', space=sflag, size = 0x4, scoped, tag = 'scoped memory for tpu_custom_call.1']
    #allocation7 [shape = 'u8[16384]{0}', space=vmem, size = 0x4000, scoped, tag = 'input window, operand 3, single buffered']
    #allocation8 [shape = 'u8[4096]{0}', space=vmem, size = 0x1000, scoped, tag = 'output window, operand 0, single buffered']
    %10 = vsyncpa [#allocation3], 0
    %11 = vsyncpa [#allocation6], 0
    %12 = vsyncpa [#allocation4], 0
    // Predicated region
    $region2: #{tpu_custom_call.1} parent=1 // pred_check
      _
    $region3: #{tpu_custom_call.1} parent=1 // pred_check_branch
      %14 = sbr.rel (0) target = $region5
    $region4: #{tpu_custom_call.1} parent=1 // pred_region
      %s16 = ssub.s32 128, 32
      %17 = vsyncadd [#allocation3], %s16
      %s18 = sshll.u32 [#allocation2], 4
      %s19 = int_to_ptr.vmem [resolvable:$true] %s18
      %24 = dma.hbm_to_vmem [thread:$0]  %s0, 32, %s19, [#allocation3], 32, 32, 2
    $region5: #{tpu_custom_call.1} parent=1 // pred_fallthru
      _
    // Predicated region
    $region6: #{tpu_custom_call.1} parent=1 // pred_check
      _
    $region7: #{tpu_custom_call.1} parent=1 // pred_check_branch
      %26 = sbr.rel (0) target = $region9
    $region8: #{tpu_custom_call.1} parent=1 // pred_region
      %s28 = ssub.s32 512, 512
      %29 = vsyncadd [#allocation6], %s28
      %s30 = sshll.u32 [#allocation5], 4
      %s31 = int_to_ptr.vmem [resolvable:$true] %s30
      %36 = dma.hbm_to_vmem [thread:$0]  %s1, 512, %s31, [#allocation6], 128, 128, 8
    $region9: #{tpu_custom_call.1} parent=1 // pred_fallthru
      _
    // Predicated region
    $region10: #{tpu_custom_call.1} parent=1 // pred_check
      _
    $region11: #{tpu_custom_call.1} parent=1 // pred_check_branch
      %38 = sbr.rel (0) target = $region13
    $region12: #{tpu_custom_call.1} parent=1 // pred_region
      _
    $region13: #{tpu_custom_call.1} parent=1 // pred_fallthru
      _
    // Predicated region
    $region14: #{tpu_custom_call.1} parent=1 // pred_check
      _
    $region15: #{tpu_custom_call.1} parent=1 // pred_check_branch
      %40 = sbr.rel (0) target = $region17
    $region16: #{tpu_custom_call.1} parent=1 // pred_region
      %s42 = ssub.s32 512, 512
      %43 = vsyncadd [#allocation6], %s42
      %s44 = sshll.u32 [#allocation7], 4
      %s45 = int_to_ptr.vmem [resolvable:$true] %s44
      %50 = dma.hbm_to_vmem [thread:$0]  %s3, 512, %s45, [#allocation6], 128, 128, 8
    $region17: #{tpu_custom_call.1} parent=1 // pred_fallthru
      _
    // Predicated region
    $region18: #{tpu_custom_call.1} parent=1 // pred_check
      _
    $region19: #{tpu_custom_call.1} parent=1 // pred_check_branch
      %52 = sbr.rel (0) target = $region21
    $region20: #{tpu_custom_call.1} parent=1 // pred_region
      _
    $region21: #{tpu_custom_call.1} parent=1 // pred_fallthru
      _
    // Predicated region
    $region22: #{tpu_custom_call.1} parent=1 // pred_check
      _
    $region23: #{tpu_custom_call.1} parent=1 // pred_check_branch
      %54 = sbr.rel (0) target = $region25
    $region24: #{tpu_custom_call.1} parent=1 // pred_region
      %55 = dma.done [#allocation3], 128
    $region25: #{tpu_custom_call.1} parent=1 // pred_fallthru
      _
    // Predicated region
    $region26: #{tpu_custom_call.1} parent=1 // pred_check
      _
    $region27: #{tpu_custom_call.1} parent=1 // pred_check_branch
      %57 = sbr.rel (0) target = $region29
    $region28: #{tpu_custom_call.1} parent=1 // pred_region
      %58 = dma.done [#allocation6], 512
    $region29: #{tpu_custom_call.1} parent=1 // pred_fallthru
      _
    // Predicated region
    $region30: #{tpu_custom_call.1} parent=1 // pred_check
      _
    $region31: #{tpu_custom_call.1} parent=1 // pred_check_branch
      %60 = sbr.rel (0) target = $region33
    $region32: #{tpu_custom_call.1} parent=1 // pred_region
      %61 = dma.done [#allocation6], 512
    $region33: #{tpu_custom_call.1} parent=1 // pred_fallthru
      _
    %v62 = vld [vmem:[#allocation2] sm:$0xff]
    %v63 = vld [vmem:[#allocation5] sm:$0xff]
    %v64 = vld [vmem:[#allocation5 + $0x8] sm:$0xff]
    %v65 = vld [vmem:[#allocation5 + $0x10] sm:$0xff]
    %v66 = vld [vmem:[#allocation5 + $0x18] sm:$0xff]
    %v67 = vld [vmem:[%s2] sm:$0x1]
    %v69 = vlaneseq
    %v70 = vshrl.u32 %v69, 7
    %v71 = vsub.s32 0, %v70
    %v72 = vrot.slane %v67, %v71
    %vm74 = vcmask 261120
    %v76 = vsel %vm74, %v62, 0
    %78 = vmatprep.subr.mxu0 0.0
    %79 = vmatpush1.msra.mxu0 %v63
    %80 = vmatprep.subr.mxu0 0.0
    %81 = vmatpush1.msra.mxu0 %v64
    %82 = vmatprep.subr.mxu0 0.0
    %83 = vmatpush1.msra.mxu0 %v65
    %84 = vmatprep.subr.mxu0 0.0
    %85 = vmatpush1.msra.mxu0 %v66
    %86 = vmatprep.subr.mxu0 0.0
    %87 = vmatpush1.msra.mxu0 0.0
    %88 = vmatprep.subr.mxu0 0.0
    %89 = vmatpush1.msra.mxu0 0.0
    %90 = vmatprep.subr.mxu0 0.0
    %91 = vmatpush1.msra.mxu0 0.0
    %92 = vmatprep.subr.mxu0 0.0
    %93 = vmatpush1.msra.mxu0 0.0
    %94 = vmatprep.subr.mxu0 0.0
    %95 = vmatpush1.msra.mxu0 0.0
    %96 = vmatprep.subr.mxu0 0.0
    %97 = vmatpush1.msra.mxu0 0.0
    %98 = vmatprep.subr.mxu0 0.0
    %99 = vmatpush1.msra.mxu0 0.0
    %100 = vmatprep.subr.mxu0 0.0
    %101 = vmatpush1.msra.mxu0 0.0
    %102 = vmatprep.subr.mxu0 0.0
    %103 = vmatpush1.msra.mxu0 0.0
    %104 = vmatprep.subr.mxu0 0.0
    %105 = vmatpush1.msra.mxu0 0.0
    %106 = vmatprep.subr.mxu0 0.0
    %107 = vmatpush1.msra.mxu0 0.0
    %108 = vmatprep.subr.mxu0 0.0
    %109 = vmatpush1.msra.mxu0 0.0
    %110 = vmatprep.subr.mxu0 0.0
    %111 = vmatpush1.msra.mxu0 0.0
    %112 = vmatprep.subr.mxu0 0.0
    %113 = vmatpush1.msra.mxu0 0.0
    %114 = vmatprep.subr.mxu0 0.0
    %115 = vmatpush1.msra.mxu0 0.0
    %116 = vmatprep.subr.mxu0 0.0
    %117 = vmatpush1.msra.mxu0 0.0
    %118 = vmatprep.subr.mxu0 0.0
    %119 = vmatpush1.msra.mxu0 0.0
    %120 = vmatprep.subr.mxu0 0.0
    %121 = vmatpush1.msra.mxu0 0.0
    %122 = vmatprep.subr.mxu0 0.0
    %123 = vmatpush1.msra.mxu0 0.0
    %124 = vmatprep.subr.mxu0 0.0
    %125 = vmatpush1.msra.mxu0 0.0
    %126 = vmatprep.subr.mxu0 0.0
    %127 = vmatpush1.msra.mxu0 0.0
    %128 = vmatprep.subr.mxu0 0.0
    %129 = vmatpush1.msra.mxu0 0.0
    %130 = vmatprep.subr.mxu0 0.0
    %131 = vmatpush1.msra.mxu0 0.0
    %132 = vmatprep.subr.mxu0 0.0
    %133 = vmatpush1.msra.mxu0 0.0
    %134 = vmatprep.subr.mxu0 0.0
    %135 = vmatpush1.msra.mxu0 0.0
    %136 = vmatprep.subr.mxu0 0.0
    %137 = vmatpush1.msra.mxu0 0.0
    %138 = vmatprep.subr.mxu0 0.0
    %139 = vmatpush1.msra.mxu0 0.0
    %140 = vmatprep.subr.mxu0 0.0
    %141 = vmatpush1.msra.mxu0 0.0
    %142 = vmatprep.mubr.f32.mxu0 0.0
    %143 = vmatmul.mubr.f32.gmra.mrb[0].mxu0 %v76
    %v144 = vpop.f32.mrb[0].mxu0
    %v145 = vadd.f32 %v72, %v144
    %v146 = vpop.f32.mrb[0].mxu0
    %147 = vdwg.mxu0
    %v148 = vtanh.pop %v145
    %v149 = vld [vmem:[#allocation7] sm:$0xff]
    %v150 = vld [vmem:[#allocation7 + $0x8] sm:$0xff]
    %v151 = vld [vmem:[#allocation7 + $0x10] sm:$0xff]
    %v152 = vld [vmem:[#allocation7 + $0x18] sm:$0xff]
    %v153 = vld [vmem:[%s4] sm:$0x1]
    %v155 = vlaneseq
    %v156 = vshrl.u32 %v155, 7
    %v157 = vsub.s32 0, %v156
    %v158 = vrot.slane %v153, %v157
    %v161 = vsel %vm74, %v148, 0
    %163 = vmatprep.subr.mxu0 0.0
    %164 = vmatpush1.msra.mxu0 %v149
    %165 = vmatprep.subr.mxu0 0.0
    %166 = vmatpush1.msra.mxu0 %v150
    %167 = vmatprep.subr.mxu0 0.0
    %168 = vmatpush1.msra.mxu0 %v151
    %169 = vmatprep.subr.mxu0 0.0
    %170 = vmatpush1.msra.mxu0 %v152
    %171 = vmatprep.subr.mxu0 0.0
    %172 = vmatpush1.msra.mxu0 0.0
    %173 = vmatprep.subr.mxu0 0.0
    %174 = vmatpush1.msra.mxu0 0.0
    %175 = vmatprep.subr.mxu0 0.0
    %176 = vmatpush1.msra.mxu0 0.0
    %177 = vmatprep.subr.mxu0 0.0
    %178 = vmatpush1.msra.mxu0 0.0
    %179 = vmatprep.subr.mxu0 0.0
    %180 = vmatpush1.msra.mxu0 0.0
    %181 = vmatprep.subr.mxu0 0.0
    %182 = vmatpush1.msra.mxu0 0.0
    %183 = vmatprep.subr.mxu0 0.0
    %184 = vmatpush1.msra.mxu0 0.0
    %185 = vmatprep.subr.mxu0 0.0
    %186 = vmatpush1.msra.mxu0 0.0
    %187 = vmatprep.subr.mxu0 0.0
    %188 = vmatpush1.msra.mxu0 0.0
    %189 = vmatprep.subr.mxu0 0.0
    %190 = vmatpush1.msra.mxu0 0.0
    %191 = vmatprep.subr.mxu0 0.0
    %192 = vmatpush1.msra.mxu0 0.0
    %193 = vmatprep.subr.mxu0 0.0
    %194 = vmatpush1.msra.mxu0 0.0
    %195 = vmatprep.subr.mxu0 0.0
    %196 = vmatpush1.msra.mxu0 0.0
    %197 = vmatprep.subr.mxu0 0.0
    %198 = vmatpush1.msra.mxu0 0.0
    %199 = vmatprep.subr.mxu0 0.0
    %200 = vmatpush1.msra.mxu0 0.0
    %201 = vmatprep.subr.mxu0 0.0
    %202 = vmatpush1.msra.mxu0 0.0
    %203 = vmatprep.subr.mxu0 0.0
    %204 = vmatpush1.msra.mxu0 0.0
    %205 = vmatprep.subr.mxu0 0.0
    %206 = vmatpush1.msra.mxu0 0.0
    %207 = vmatprep.subr.mxu0 0.0
    %208 = vmatpush1.msra.mxu0 0.0
    %209 = vmatprep.subr.mxu0 0.0
    %210 = vmatpush1.msra.mxu0 0.0
    %211 = vmatprep.subr.mxu0 0.0
    %212 = vmatpush1.msra.mxu0 0.0
    %213 = vmatprep.subr.mxu0 0.0
    %214 = vmatpush1.msra.mxu0 0.0
    %215 = vmatprep.subr.mxu0 0.0
    %216 = vmatpush1.msra.mxu0 0.0
    %217 = vmatprep.subr.mxu0 0.0
    %218 = vmatpush1.msra.mxu0 0.0
    %219 = vmatprep.subr.mxu0 0.0
    %220 = vmatpush1.msra.mxu0 0.0
    %221 = vmatprep.subr.mxu0 0.0
    %222 = vmatpush1.msra.mxu0 0.0
    %223 = vmatprep.subr.mxu0 0.0
    %224 = vmatpush1.msra.mxu0 0.0
    %225 = vmatprep.subr.mxu0 0.0
    %226 = vmatpush1.msra.mxu0 0.0
    %227 = vmatprep.mubr.f32.mxu0 0.0
    %228 = vmatmul.mubr.f32.gmra.mrb[0].mxu0 %v161
    %v229 = vpop.f32.mrb[0].mxu0
    %v230 = vadd.f32 %v158, %v229
    %v231 = vpop.f32.mrb[0].mxu0
    %232 = vdwg.mxu0
    %233 = vst [vmem:[#allocation8] sm:$0xff] %v230
    // Predicated region
    $region34: #{tpu_custom_call.1} parent=1 // pred_check
      _
    $region35: #{tpu_custom_call.1} parent=1 // pred_check_branch
      %235 = sbr.rel (0) target = $region37
    $region36: #{tpu_custom_call.1} parent=1 // pred_region
      %s237 = ssub.s32 128, 32
      %238 = vsyncadd [#allocation4], %s237
      %s239 = sshll.u32 [#allocation8], 4
      %s240 = int_to_ptr.vmem [resolvable:$true] %s239
      %245 = dma.vmem_to_hbm [thread:$0]  %s240, 32, %s5, [#allocation4], 32, 32, 2
    $region37: #{tpu_custom_call.1} parent=1 // pred_fallthru
      _
    // Predicated region
    $region38: #{tpu_custom_call.1} parent=1 // pred_check
      _
    $region39: #{tpu_custom_call.1} parent=1 // pred_check_branch
      %247 = sbr.rel (0) target = $region41
    $region40: #{tpu_custom_call.1} parent=1 // pred_region
      %248 = dma.done [#allocation4], 128
    $region41: #{tpu_custom_call.1} parent=1 // pred_fallthru
      _
    %249 = vsyncpa [#allocation3], 1
    %250 = vsyncpa [#allocation6], 1
    %251 = vsyncpa [#allocation4], 1

</llo_original>
